<compile_context>
chip_gen: v6e
topology: v6e:2x2x1
jax: 0.10.0
libtpu: 0.0.40
codegen_flags: <defaults>
</compile_context>

<pallas_src>
import jax
import jax.numpy as jnp
from jax.experimental import pallas as pl
from jax.experimental.pallas import tpu as pltpu

IN_FEATURES = 6
OUT_FEATURES = 2

_LANE = 128          # TPU lane width
_TB_MAX = 4096       # lane-tile: (6, 4096) f32 in + (2, 4096) f32 out,
                     # double-buffered, is < 300 KiB -> fits every generation's
                     # scoped VMEM (16/32 MiB defaults) with huge headroom.


def _linear_kernel(w_ref, b_ref, xT_ref, oT_ref):
    """out^T[j, :] = sum_k w[k, j] * x^T[k, :] + b[j]   (pure VPU).

    w_ref : (6, 2)  f32 in SMEM   (scalar reads, broadcast across lanes)
    b_ref : (2,)    f32 in SMEM
    xT_ref: (6, TB) input tile in VMEM (cast to f32 in-kernel)
    oT_ref: (2, TB) output tile in VMEM (lane-dense)
    """
    x = xT_ref[...].astype(jnp.float32)          # (6, TB)
    rows = []
    for j in range(OUT_FEATURES):                # 2 output features
        acc = x[0:1, :] * w_ref[0, j]
        for k in range(1, IN_FEATURES):          # 6 input features
            acc = acc + x[k:k + 1, :] * w_ref[k, j]
        rows.append(acc + b_ref[j])
    oT_ref[...] = jnp.concatenate(rows, axis=0).astype(oT_ref.dtype)


def neural_network_forward(x, w, b):
    """x: (B, ...) with prod(...) == 6  ->  logits (B, 2). Flatten + Linear(6, 2).

    NOTE: for genuinely tiny batches (e.g. B=8) plain `x @ w + b` fused by XLA
    is cheaper than any kernel launch; the Pallas path is kept unconditional
    here so the kernel itself is exercised.
    """
    batch = x.shape[0]
    x2d = x.reshape(batch, -1)                   # nn.Flatten (no dtype copy)
    assert x2d.shape[1] == IN_FEATURES, (
        f"expected {IN_FEATURES} features after flatten, got {x2d.shape[1]}")

    # Batch tile: multiple of the 128-lane width, capped at _TB_MAX.
    tb = min(_TB_MAX, pl.cdiv(batch, _LANE) * _LANE)
    b_pad = pl.cdiv(batch, tb) * tb

    # Lane-dense layout: batch on the last (lane) axis.
    xT = x2d.T                                   # (6, B)
    if b_pad != batch:
        xT = jnp.pad(xT, ((0, 0), (0, b_pad - batch)))

    w_smem = w.astype(jnp.float32)               # (6, 2)  -- 12 scalars
    b_smem = b.reshape(OUT_FEATURES).astype(jnp.float32)   # (2,)

    outT = pl.pallas_call(
        _linear_kernel,
        out_shape=jax.ShapeDtypeStruct((OUT_FEATURES, b_pad), jnp.float32),
        grid_spec=pltpu.PrefetchScalarGridSpec(
            num_scalar_prefetch=0,
            grid=(b_pad // tb,),
            in_specs=[
                pl.BlockSpec(memory_space=pltpu.MemorySpace.SMEM),      # w
                pl.BlockSpec(memory_space=pltpu.MemorySpace.SMEM),      # b
                pl.BlockSpec((IN_FEATURES, tb), lambda i: (0, i)),      # x^T tile
            ],
            out_specs=pl.BlockSpec((OUT_FEATURES, tb), lambda i: (0, i)),
        ),
        compiler_params=pltpu.CompilerParams(
            # Independent batch tiles: shards across both TCs on v7x,
            # harmless on single-TC v5e/v6e.
            dimension_semantics=("parallel",),
            # Tiny tiles -> well under every generation's physical VMEM.
            vmem_limit_bytes=32 * 1024 * 1024,
        ),
    )(w_smem, b_smem, xT)

    # Strip batch padding and return torch-style (B, 2).
    return outT[:, :batch].T


def init_params(key):
    # torch.nn.Linear-style init: U(-1/sqrt(fan_in), 1/sqrt(fan_in)).
    k_w, k_b = jax.random.split(key)
    bound = 1.0 / jnp.sqrt(jnp.float32(IN_FEATURES))
    w = jax.random.uniform(k_w, (IN_FEATURES, OUT_FEATURES),
                           minval=-bound, maxval=bound, dtype=jnp.float32)
    b = jax.random.uniform(k_b, (OUT_FEATURES,),
                           minval=-bound, maxval=bound, dtype=jnp.float32)
    return w, b


if __name__ == "__main__":
    key = jax.random.PRNGKey(0)
    k_x, k_p = jax.random.split(key)

    # (B, 2, 3) exercises nn.Flatten -> (B, 6).
    batch = 8
    x = jax.random.normal(k_x, (batch, 2, 3), dtype=jnp.float32)
    w, b = init_params(k_p)

    logits = neural_network_forward(x, w, b)
    logits = jax.block_until_ready(logits)

    # Reference: same math as torch.nn.Linear (x_flat @ W + b).
    ref = x.reshape(batch, -1) @ w + b
    assert logits.shape == (batch, OUT_FEATURES)
    assert jnp.allclose(logits, ref, atol=1e-5, rtol=1e-5)

    print("KERNEL_OK")
</pallas_src>

<mosaic_0001>
module attributes {stable_mosaic.version = 11 : i64} {
  func.func @_linear_kernel(%arg0: i32, %arg1: memref<6x2xf32, #tpu.memory_space<smem>>, %arg2: memref<2xf32, #tpu.memory_space<smem>>, %arg3: memref<6x128xf32, #tpu.memory_space<vmem>>, %arg4: memref<2x128xf32, #tpu.memory_space<vmem>>) attributes {dimension_semantics = [#tpu.dimension_semantics<parallel>], iteration_bounds = array<i64: 1>, scalar_prefetch = 0 : i64, scratch_operands = 0 : i64, tpu.core_type = #tpu.core_type<tc>, window_params = [{transform_indices = @transform_0, window_bounds = array<i64: 6, 2>}, {transform_indices = @transform_1, window_bounds = array<i64: 2>}, {transform_indices = @transform_2, window_bounds = array<i64: 6, 128>}, {transform_indices = @transform_3, window_bounds = array<i64: 2, 128>}]} {
    %c0 = arith.constant 0 : index
    %c0_0 = arith.constant 0 : index
    %0 = vector.load %arg3[%c0, %c0_0] : memref<6x128xf32, #tpu.memory_space<vmem>>, vector<6x128xf32>
    %1 = vector.extract_strided_slice %0 {offsets = [0, 0], sizes = [1, 128], strides = [1, 1]} : vector<6x128xf32> to vector<1x128xf32>
    %c0_1 = arith.constant 0 : index
    %c0_2 = arith.constant 0 : index
    %2 = memref.load %arg1[%c0_1, %c0_2] : memref<6x2xf32, #tpu.memory_space<smem>>
    %3 = vector.broadcast %2 : f32 to vector<1x128xf32>
    %4 = arith.mulf %1, %3 : vector<1x128xf32>
    %5 = vector.extract_strided_slice %0 {offsets = [1, 0], sizes = [1, 128], strides = [1, 1]} : vector<6x128xf32> to vector<1x128xf32>
    %c1 = arith.constant 1 : index
    %c0_3 = arith.constant 0 : index
    %6 = memref.load %arg1[%c1, %c0_3] : memref<6x2xf32, #tpu.memory_space<smem>>
    %7 = vector.broadcast %6 : f32 to vector<1x128xf32>
    %8 = arith.mulf %5, %7 : vector<1x128xf32>
    %9 = arith.addf %4, %8 : vector<1x128xf32>
    %10 = vector.extract_strided_slice %0 {offsets = [2, 0], sizes = [1, 128], strides = [1, 1]} : vector<6x128xf32> to vector<1x128xf32>
    %c2 = arith.constant 2 : index
    %c0_4 = arith.constant 0 : index
    %11 = memref.load %arg1[%c2, %c0_4] : memref<6x2xf32, #tpu.memory_space<smem>>
    %12 = vector.broadcast %11 : f32 to vector<1x128xf32>
    %13 = arith.mulf %10, %12 : vector<1x128xf32>
    %14 = arith.addf %9, %13 : vector<1x128xf32>
    %15 = vector.extract_strided_slice %0 {offsets = [3, 0], sizes = [1, 128], strides = [1, 1]} : vector<6x128xf32> to vector<1x128xf32>
    %c3 = arith.constant 3 : index
    %c0_5 = arith.constant 0 : index
    %16 = memref.load %arg1[%c3, %c0_5] : memref<6x2xf32, #tpu.memory_space<smem>>
    %17 = vector.broadcast %16 : f32 to vector<1x128xf32>
    %18 = arith.mulf %15, %17 : vector<1x128xf32>
    %19 = arith.addf %14, %18 : vector<1x128xf32>
    %20 = vector.extract_strided_slice %0 {offsets = [4, 0], sizes = [1, 128], strides = [1, 1]} : vector<6x128xf32> to vector<1x128xf32>
    %c4 = arith.constant 4 : index
    %c0_6 = arith.constant 0 : index
    %21 = memref.load %arg1[%c4, %c0_6] : memref<6x2xf32, #tpu.memory_space<smem>>
    %22 = vector.broadcast %21 : f32 to vector<1x128xf32>
    %23 = arith.mulf %20, %22 : vector<1x128xf32>
    %24 = arith.addf %19, %23 : vector<1x128xf32>
    %25 = vector.extract_strided_slice %0 {offsets = [5, 0], sizes = [1, 128], strides = [1, 1]} : vector<6x128xf32> to vector<1x128xf32>
    %c5 = arith.constant 5 : index
    %c0_7 = arith.constant 0 : index
    %26 = memref.load %arg1[%c5, %c0_7] : memref<6x2xf32, #tpu.memory_space<smem>>
    %27 = vector.broadcast %26 : f32 to vector<1x128xf32>
    %28 = arith.mulf %25, %27 : vector<1x128xf32>
    %29 = arith.addf %24, %28 : vector<1x128xf32>
    %c0_8 = arith.constant 0 : index
    %30 = memref.load %arg2[%c0_8] : memref<2xf32, #tpu.memory_space<smem>>
    %31 = vector.broadcast %30 : f32 to vector<1x128xf32>
    %32 = arith.addf %29, %31 : vector<1x128xf32>
    %33 = vector.extract_strided_slice %0 {offsets = [0, 0], sizes = [1, 128], strides = [1, 1]} : vector<6x128xf32> to vector<1x128xf32>
    %c0_9 = arith.constant 0 : index
    %c1_10 = arith.constant 1 : index
    %34 = memref.load %arg1[%c0_9, %c1_10] : memref<6x2xf32, #tpu.memory_space<smem>>
    %35 = vector.broadcast %34 : f32 to vector<1x128xf32>
    %36 = arith.mulf %33, %35 : vector<1x128xf32>
    %37 = vector.extract_strided_slice %0 {offsets = [1, 0], sizes = [1, 128], strides = [1, 1]} : vector<6x128xf32> to vector<1x128xf32>
    %c1_11 = arith.constant 1 : index
    %c1_12 = arith.constant 1 : index
    %38 = memref.load %arg1[%c1_11, %c1_12] : memref<6x2xf32, #tpu.memory_space<smem>>
    %39 = vector.broadcast %38 : f32 to vector<1x128xf32>
    %40 = arith.mulf %37, %39 : vector<1x128xf32>
    %41 = arith.addf %36, %40 : vector<1x128xf32>
    %42 = vector.extract_strided_slice %0 {offsets = [2, 0], sizes = [1, 128], strides = [1, 1]} : vector<6x128xf32> to vector<1x128xf32>
    %c2_13 = arith.constant 2 : index
    %c1_14 = arith.constant 1 : index
    %43 = memref.load %arg1[%c2_13, %c1_14] : memref<6x2xf32, #tpu.memory_space<smem>>
    %44 = vector.broadcast %43 : f32 to vector<1x128xf32>
    %45 = arith.mulf %42, %44 : vector<1x128xf32>
    %46 = arith.addf %41, %45 : vector<1x128xf32>
    %47 = vector.extract_strided_slice %0 {offsets = [3, 0], sizes = [1, 128], strides = [1, 1]} : vector<6x128xf32> to vector<1x128xf32>
    %c3_15 = arith.constant 3 : index
    %c1_16 = arith.constant 1 : index
    %48 = memref.load %arg1[%c3_15, %c1_16] : memref<6x2xf32, #tpu.memory_space<smem>>
    %49 = vector.broadcast %48 : f32 to vector<1x128xf32>
    %50 = arith.mulf %47, %49 : vector<1x128xf32>
    %51 = arith.addf %46, %50 : vector<1x128xf32>
    %52 = vector.extract_strided_slice %0 {offsets = [4, 0], sizes = [1, 128], strides = [1, 1]} : vector<6x128xf32> to vector<1x128xf32>
    %c4_17 = arith.constant 4 : index
    %c1_18 = arith.constant 1 : index
    %53 = memref.load %arg1[%c4_17, %c1_18] : memref<6x2xf32, #tpu.memory_space<smem>>
    %54 = vector.broadcast %53 : f32 to vector<1x128xf32>
    %55 = arith.mulf %52, %54 : vector<1x128xf32>
    %56 = arith.addf %51, %55 : vector<1x128xf32>
    %57 = vector.extract_strided_slice %0 {offsets = [5, 0], sizes = [1, 128], strides = [1, 1]} : vector<6x128xf32> to vector<1x128xf32>
    %c5_19 = arith.constant 5 : index
    %c1_20 = arith.constant 1 : index
    %58 = memref.load %arg1[%c5_19, %c1_20] : memref<6x2xf32, #tpu.memory_space<smem>>
    %59 = vector.broadcast %58 : f32 to vector<1x128xf32>
    %60 = arith.mulf %57, %59 : vector<1x128xf32>
    %61 = arith.addf %56, %60 : vector<1x128xf32>
    %c1_21 = arith.constant 1 : index
    %62 = memref.load %arg2[%c1_21] : memref<2xf32, #tpu.memory_space<smem>>
    %63 = vector.broadcast %62 : f32 to vector<1x128xf32>
    %64 = arith.addf %61, %63 : vector<1x128xf32>
    %65 = tpu.concatenate %32, %64 in 0 : vector<1x128xf32>, vector<1x128xf32> -> vector<2x128xf32>
    %c0_22 = arith.constant 0 : index
    %c0_23 = arith.constant 0 : index
    %66 = vector.load %arg4[%c0_22, %c0_23] : memref<2x128xf32, #tpu.memory_space<vmem>>, vector<2x128xf32>
    tpu.vector_store %arg4[%c0_22, %c0_23], %65 {strides = array<i32>} : memref<2x128xf32, #tpu.memory_space<vmem>>, vector<2x128xf32>,
    return
  }
  func.func @transform_0(%arg0: i32) -> (i32, i32) {
    %c0_i32 = arith.constant 0 : i32
    %c0_i32_0 = arith.constant 0 : i32
    %c0_i32_1 = arith.constant 0 : i32
    return %c0_i32, %c0_i32_0 : i32, i32
  }
  func.func @transform_1(%arg0: i32) -> i32 {
    %c0_i32 = arith.constant 0 : i32
    %c0_i32_0 = arith.constant 0 : i32
    return %c0_i32 : i32
  }
  func.func @transform_2(%arg0: i32) -> (i32, i32) {
    %c0_i32 = arith.constant 0 : i32
    %c0_i32_0 = arith.constant 0 : i32
    return %c0_i32, %arg0 : i32, i32
  }
  func.func @transform_3(%arg0: i32) -> (i32, i32) {
    %c0_i32 = arith.constant 0 : i32
    %c0_i32_0 = arith.constant 0 : i32
    return %c0_i32, %arg0 : i32, i32
  }
}

</mosaic_0001>

<llo_original>
// kernel: tpu_custom_call.1
$region0: #{tpu_custom_call.1}
  #allocation0 [shape = 'u32[]', space=smem, size = 0x4, offset = 0x4, fixed_abs, tag = 'smem constant byte address 0x4 - core index']
  #allocation1 [shape = 'u32[144,128]{1,0:T(1,128)}', space=vmem, size = 0x12000, scoped, tag = 'internal scratch']
  %s0 = inlined_call_operand.vmem [shape: f32[6,2], index: 0, kind: input, shape index: {}]
  %s1 = inlined_call_operand.vmem [shape: f32[2], index: 1, kind: input, shape index: {}]
  %s2 = inlined_call_operand.vmem [shape: f32[6,128], index: 2, kind: input, shape index: {}]
  %s3 = inlined_call_operand.hbm [shape: f32[2,128], index: 3, kind: output, shape index: {}]
  %s4 = sld [smem:[#allocation0]]
  $region30: #{tpu_custom_call.1} parent=0
    _
  %s6 = ssub.s32 1, %s4
  %s7 = scalar_select 0, %s6, %s4
  $region1: #{tpu_custom_call.1} parent=0
    #allocation2 [shape = 'u8[4096]{0}', space=smem, size = 0x1000, scoped, tag = 'input window, operand 0, single buffered']
    #allocation3 [shape = 's32[1]{0}', space=sflag, size = 0x4, scoped, tag = 'scoped memory for tpu_custom_call.1']
    #allocation4 [shape = 's32[1]{0}', space=sflag, size = 0x4, scoped, tag = 'scoped memory for tpu_custom_call.1']
    #allocation5 [shape = 'u8[512]{0}', space=smem, size = 0x200, scoped, tag = 'input window, operand 1, single buffered']
    #allocation6 [shape = 's32[1]{0}', space=sflag, size = 0x4, scoped, tag = 'scoped memory for tpu_custom_call.1']
    #allocation7 [shape = 'u8[1024]{0}', space=vmem, size = 0x400, scoped, tag = 'output window, operand 0, single buffered']
    %8 = vsyncpa [#allocation4], 0
    %9 = vsyncpa [#allocation6], 0
    %10 = vsyncpa [#allocation3], 0
    // Predicated region
    $region2: #{tpu_custom_call.1} parent=1 // pred_check
      _
    $region3: #{tpu_custom_call.1} parent=1 // pred_check_branch
      %12 = sbr.rel (0) target = $region5
    $region4: #{tpu_custom_call.1} parent=1 // pred_region
      %s14 = ssub.s32 128, 128
      %15 = vsyncadd [#allocation4], %s14
      %s17 = sshll.u32 %s0, 4
      %s18 = int_to_ptr.vmem [resolvable:$true] %s17
      %20 = dma.vmem_to_smem %s18, 128, [#allocation2], [#allocation4]
    $region5: #{tpu_custom_call.1} parent=1 // pred_fallthru
      _
    // Predicated region
    $region6: #{tpu_custom_call.1} parent=1 // pred_check
      _
    $region7: #{tpu_custom_call.1} parent=1 // pred_check_branch
      %22 = sbr.rel (0) target = $region9
    $region8: #{tpu_custom_call.1} parent=1 // pred_region
      %s24 = ssub.s32 16, 16
      %25 = vsyncadd [#allocation6], %s24
      %s27 = sshll.u32 %s1, 4
      %s28 = int_to_ptr.vmem [resolvable:$true] %s27
      %30 = dma.vmem_to_smem %s28, 16, [#allocation5], [#allocation6]
    $region9: #{tpu_custom_call.1} parent=1 // pred_fallthru
      _
    // Predicated region
    $region10: #{tpu_custom_call.1} parent=1 // pred_check
      _
    $region11: #{tpu_custom_call.1} parent=1 // pred_check_branch
      %32 = sbr.rel (0) target = $region13
    $region12: #{tpu_custom_call.1} parent=1 // pred_region
      _
    $region13: #{tpu_custom_call.1} parent=1 // pred_fallthru
      _
    // Predicated region
    $region14: #{tpu_custom_call.1} parent=1 // pred_check
      _
    $region15: #{tpu_custom_call.1} parent=1 // pred_check_branch
      %34 = sbr.rel (0) target = $region17
    $region16: #{tpu_custom_call.1} parent=1 // pred_region
      %35 = dma.done [#allocation4], 128
    $region17: #{tpu_custom_call.1} parent=1 // pred_fallthru
      _
    // Predicated region
    $region18: #{tpu_custom_call.1} parent=1 // pred_check
      _
    $region19: #{tpu_custom_call.1} parent=1 // pred_check_branch
      %37 = sbr.rel (0) target = $region21
    $region20: #{tpu_custom_call.1} parent=1 // pred_region
      %38 = dma.done [#allocation6], 16
    $region21: #{tpu_custom_call.1} parent=1 // pred_fallthru
      _
    %39 = sfence
    %v40 = vld [vmem:[%s2] sm:$0x3f]
    %s41 = sld [smem:[#allocation2]]
    %v42 = vstv %s41
    %v43 = vmul.f32 %v40, %v42
    %s44 = sld [smem:[#allocation2 + $0x80]]
    %v45 = vstv %s44
    %v46 = vmul.f32 %v40, %v45
    %v48 = vrot.slane %v46, 1
    %v50 = vadd.f32 %v43, %v48
    %s51 = sld [smem:[#allocation2 + $0x100]]
    %v52 = vstv %s51
    %v53 = vmul.f32 %v40, %v52
    %v55 = vrot.slane %v53, 2
    %v57 = vadd.f32 %v50, %v55
    %s58 = sld [smem:[#allocation2 + $0x180]]
    %v59 = vstv %s58
    %v60 = vmul.f32 %v40, %v59
    %v62 = vrot.slane %v60, 3
    %v64 = vadd.f32 %v57, %v62
    %s65 = sld [smem:[#allocation2 + $0x200]]
    %v66 = vstv %s65
    %v67 = vmul.f32 %v40, %v66
    %v69 = vrot.slane %v67, 4
    %v71 = vadd.f32 %v64, %v69
    %s72 = sld [smem:[#allocation2 + $0x280]]
    %v73 = vstv %s72
    %v74 = vmul.f32 %v40, %v73
    %v76 = vrot.slane %v74, 5
    %v78 = vadd.f32 %v71, %v76
    %s79 = sld [smem:[#allocation5]]
    %v80 = vstv %s79
    %v81 = vadd.f32 %v78, %v80
    %s82 = sld [smem:[#allocation2 + $0x1]]
    %v83 = vstv %s82
    %v84 = vmul.f32 %v40, %v83
    %s85 = sld [smem:[#allocation2 + $0x81]]
    %v86 = vstv %s85
    %v87 = vmul.f32 %v40, %v86
    %v89 = vrot.slane %v87, 1
    %v91 = vadd.f32 %v84, %v89
    %s92 = sld [smem:[#allocation2 + $0x101]]
    %v93 = vstv %s92
    %v94 = vmul.f32 %v40, %v93
    %v96 = vrot.slane %v94, 2
    %v98 = vadd.f32 %v91, %v96
    %s99 = sld [smem:[#allocation2 + $0x181]]
    %v100 = vstv %s99
    %v101 = vmul.f32 %v40, %v100
    %v103 = vrot.slane %v101, 3
    %v105 = vadd.f32 %v98, %v103
    %s106 = sld [smem:[#allocation2 + $0x201]]
    %v107 = vstv %s106
    %v108 = vmul.f32 %v40, %v107
    %v110 = vrot.slane %v108, 4
    %v112 = vadd.f32 %v105, %v110
    %s113 = sld [smem:[#allocation2 + $0x281]]
    %v114 = vstv %s113
    %v115 = vmul.f32 %v40, %v114
    %v117 = vrot.slane %v115, 5
    %v119 = vadd.f32 %v112, %v117
    %s120 = sld [smem:[#allocation5 + $0x1]]
    %v121 = vstv %s120
    %v122 = vadd.f32 %v119, %v121
    %v124 = vrot.slane %v122, 7
    %vm126 = vcmask 1040384
    %v127 = vsel %vm126, %v81, %v124
    %128 = vst [vmem:[#allocation7] sm:$0x3] %v127
    // Predicated region
    $region22: #{tpu_custom_call.1} parent=1 // pred_check
      _
    $region23: #{tpu_custom_call.1} parent=1 // pred_check_branch
      %130 = sbr.rel (0) target = $region25
    $region24: #{tpu_custom_call.1} parent=1 // pred_region
      %s132 = ssub.s32 32, 32
      %133 = vsyncadd [#allocation3], %s132
      %s135 = sshll.u32 [#allocation7], 4
      %s136 = int_to_ptr.vmem [resolvable:$true] %s135
      %138 = dma.vmem_to_hbm [thread:$0]  %s136, 32, %s3, [#allocation3]
    $region25: #{tpu_custom_call.1} parent=1 // pred_fallthru
      _
    // Predicated region
    $region26: #{tpu_custom_call.1} parent=1 // pred_check
      _
    $region27: #{tpu_custom_call.1} parent=1 // pred_check_branch
      %140 = sbr.rel (0) target = $region29
    $region28: #{tpu_custom_call.1} parent=1 // pred_region
      %141 = dma.done [#allocation3], 32
    $region29: #{tpu_custom_call.1} parent=1 // pred_fallthru
      _
    %142 = vsyncpa [#allocation3], 1
    %143 = vsyncpa [#allocation4], 1
    %144 = vsyncpa [#allocation6], 1

</llo_original>
